<compile_context>
chip_gen: v7x
topology: tpu7x:2x2x1
jax: 0.10.0
libtpu: 0.0.40
codegen_flags: <defaults>
</compile_context>

<pallas_src>
import math

import jax
import jax.numpy as jnp
from jax.experimental import pallas as pl
from jax.experimental.pallas import tpu as pltpu

LANE = 128
SUBLANE_BF16 = 16


def _round_up(n, m):
    return ((n + m - 1) // m) * m


# --------------------------------------------------------------------------------------
# Kernel
# --------------------------------------------------------------------------------------
def make_resnet_kernel(n_blocks):
    """Fused ResNet forward. Ref order:
       x, first_w, first_b, [w1, b1, w2, b2] * n_blocks,
       head_scale, head_shift, head_w, head_b, out.
       (Block BatchNorm is pre-folded into w1/b1.)"""

    def kernel(*refs):
        x_ref = refs[0]
        wf_ref, bf_ref = refs[1], refs[2]
        blk = refs[3:3 + 4 * n_blocks]
        sh_ref, th_ref, wh_ref, bh_ref = refs[3 + 4 * n_blocks:3 + 4 * n_blocks + 4]
        o_ref = refs[-1]

        def dot(a_f32, w_ref):
            # bf16 MXU inputs, f32 accumulation.
            return jnp.dot(a_f32.astype(jnp.bfloat16), w_ref[...],
                           preferred_element_type=jnp.float32)

        # first_layer: Linear(d_in -> d_main)
        h = dot(x_ref[...], wf_ref) + bf_ref[...]

        # Blocks (n_blocks is static -> unrolled at trace time)
        for b in range(n_blocks):
            w1, b1, w2, b2 = blk[4 * b:4 * b + 4]
            z = dot(h, w1) + b1[...]                # BN (folded) + linear_first
            z = jnp.maximum(z, 0.0)                 # ReLU; dropout_first = identity (eval)
            z = dot(z, w2) + b2[...]                # linear_second; dropout_second = identity
            h = h + z                               # skip connection

        # Head: BatchNorm -> ReLU -> Linear
        z = h * sh_ref[...] + th_ref[...]
        z = jnp.maximum(z, 0.0)
        out = dot(z, wh_ref) + bh_ref[...]
        o_ref[...] = out.astype(o_ref.dtype)

    return kernel


# --------------------------------------------------------------------------------------
# Parameter construction / preparation
# --------------------------------------------------------------------------------------
def make_params(key, *, d_in, n_blocks, d_main, d_hidden, d_out):
    """Deterministic synthetic 'trained' params in PyTorch layout:
    nn.Linear weight (out, in); BatchNorm1d (gamma, beta, running_mean, running_var)."""

    def linear(k, fan_in, fan_out):
        kw, kb = jax.random.split(k)
        bound = 1.0 / math.sqrt(fan_in)
        w = jax.random.uniform(kw, (fan_out, fan_in), jnp.float32, -bound, bound)
        b = jax.random.uniform(kb, (fan_out,), jnp.float32, -bound, bound)
        return w, b

    def bnorm(k, d):
        k1, k2, k3, k4 = jax.random.split(k, 4)
        return dict(gamma=jax.random.uniform(k1, (d,), jnp.float32, 0.5, 1.5),
                    beta=jax.random.normal(k2, (d,), jnp.float32) * 0.1,
                    mean=jax.random.normal(k3, (d,), jnp.float32) * 0.1,
                    var=jax.random.uniform(k4, (d,), jnp.float32, 0.5, 1.5))

    ks = list(jax.random.split(key, 3 * n_blocks + 3))
    fw, fb = linear(ks[0], d_in, d_main)
    blocks = []
    for i in range(n_blocks):
        kb0, kb1, kb2 = ks[1 + 3 * i:4 + 3 * i]
        w1, b1 = linear(kb1, d_main, d_hidden)
        w2, b2 = linear(kb2, d_hidden, d_main)
        blocks.append(dict(bn=bnorm(kb0, d_main), w1=w1, b1=b1, w2=w2, b2=b2))
    head_bn = bnorm(ks[1 + 3 * n_blocks], d_main)
    hw, hb = linear(ks[2 + 3 * n_blocks], d_main, d_out)
    return dict(first_w=fw, first_b=fb, blocks=blocks, head_bn=head_bn, head_w=hw, head_b=hb)


def prepare_params(params, n_blocks, eps=1e-5):
    """One-time prep: fold eval-mode BatchNorm (Block BN folded into linear_first; Head BN
    kept as scale/shift since ReLU sits between it and the linear), transpose weights to
    (in, out), zero-pad every feature dim to a multiple of 128, cast weights to bf16
    (biases / BN affine stay f32)."""

    def fold_bn(bn):
        scale = bn["gamma"] / jnp.sqrt(bn["var"] + eps)
        shift = bn["beta"] - bn["mean"] * scale
        return scale, shift

    def pad_w(w_t, rp, cp):   # (in, out) -> zero-padded bf16
        return jnp.pad(w_t, ((0, rp - w_t.shape[0]), (0, cp - w_t.shape[1]))).astype(jnp.bfloat16)

    def pad_v(v, cp):         # (d,) -> (1, cp) f32 (zero padded)
        return jnp.pad(v, (0, cp - v.shape[0])).reshape(1, cp).astype(jnp.float32)

    d_main, d_in = params["first_w"].shape
    d_hidden = params["blocks"][0]["w1"].shape[0]
    d_out = params["head_w"].shape[0]
    d_in_p, d_main_p = _round_up(d_in, LANE), _round_up(d_main, LANE)
    d_hidden_p, d_out_p = _round_up(d_hidden, LANE), _round_up(d_out, LANE)

    flat = [pad_w(params["first_w"].T, d_in_p, d_main_p), pad_v(params["first_b"], d_main_p)]
    for blk in params["blocks"]:
        s, t = fold_bn(blk["bn"])                       # per-feature scale / shift (f32)
        w1_t = blk["w1"].T                              # (d_main, d_hidden) f32
        w1_folded = w1_t * s[:, None]                   # BN(x) @ W1 = x @ (s*W1) + (t@W1)
        b1_folded = blk["b1"] + t @ w1_t
        flat += [pad_w(w1_folded, d_main_p, d_hidden_p), pad_v(b1_folded, d_hidden_p),
                 pad_w(blk["w2"].T, d_hidden_p, d_main_p), pad_v(blk["b2"], d_main_p)]
    s, t = fold_bn(params["head_bn"])
    flat += [pad_v(s, d_main_p), pad_v(t, d_main_p),
             pad_w(params["head_w"].T, d_main_p, d_out_p), pad_v(params["head_b"], d_out_p)]

    dims = dict(d_in=d_in, d_out=d_out, d_in_p=d_in_p, d_main_p=d_main_p,
                d_hidden_p=d_hidden_p, d_out_p=d_out_p)
    return flat, dims


# --------------------------------------------------------------------------------------
# Host wrapper
# --------------------------------------------------------------------------------------
def resnet_forward(x, flat, dims, n_blocks, *, max_batch_tile=512):
    B = x.shape[0]
    d_in, d_out = dims["d_in"], dims["d_out"]
    d_in_p, d_main_p = dims["d_in_p"], dims["d_main_p"]
    d_hidden_p, d_out_p = dims["d_hidden_p"], dims["d_out_p"]

    # Batch tile: if the whole (16-aligned) batch fits in one tile, use it directly (block ==
    # full extent, bf16-sublane safe, no wasted 128-padding for small batches). Otherwise use
    # a 512-row tile (multiple of 8 and 128, safe on all generations).
    # TODO(synk): on v7x (64 MiB VMEM / TC) halve max_batch_tile and set vmem_limit_bytes
    #             once d_main/d_hidden grow into the thousands.
    TB = min(max_batch_tile, _round_up(B, SUBLANE_BF16))
    B_p = _round_up(B, TB)

    x_p = jnp.pad(x.astype(jnp.float32), ((0, B_p - B), (0, d_in_p - d_in)))

    grid = (B_p // TB,)
    in_specs = [pl.BlockSpec((TB, d_in_p), lambda i: (i, 0))]
    # Weights / biases / BN affine: full-extent blocks, constant index_map -> VMEM resident.
    in_specs += [pl.BlockSpec(p.shape, lambda i: (0, 0)) for p in flat]
    out_specs = pl.BlockSpec((TB, d_out_p), lambda i: (i, 0))

    flops = 2 * B_p * (d_in_p * d_main_p
                       + n_blocks * 2 * d_main_p * d_hidden_p
                       + d_main_p * d_out_p)
    bytes_accessed = (int(x_p.size) * 4
                      + sum(int(p.size) * p.dtype.itemsize for p in flat)
                      + B_p * d_out_p * 4)

    out = pl.pallas_call(
        make_resnet_kernel(n_blocks),
        out_shape=jax.ShapeDtypeStruct((B_p, d_out_p), jnp.float32),
        grid=grid,
        in_specs=in_specs,
        out_specs=out_specs,
        compiler_params=pltpu.CompilerParams(dimension_semantics=("parallel",)),
        cost_estimate=pl.CostEstimate(flops=flops, transcendentals=0,
                                      bytes_accessed=bytes_accessed),
    )(x_p, *flat)
    return out[:B, :d_out]


# --------------------------------------------------------------------------------------
# Pure-JAX reference (mirrors the kernel's eval-mode math: folded BN, bf16 dots, f32 acc)
# --------------------------------------------------------------------------------------
def resnet_reference(x, flat, dims, n_blocks):
    xp = jnp.pad(x.astype(jnp.float32), ((0, 0), (0, dims["d_in_p"] - x.shape[1])))

    def dot(a, w):
        return jnp.dot(a.astype(jnp.bfloat16), w, preferred_element_type=jnp.float32)

    wf, bf = flat[0], flat[1]
    h = dot(xp, wf) + bf
    for b in range(n_blocks):
        w1, b1, w2, b2 = flat[2 + 4 * b:2 + 4 * b + 4]
        z = jnp.maximum(dot(h, w1) + b1, 0.0)
        z = dot(z, w2) + b2
        h = h + z
    s, t, wh, bh = flat[2 + 4 * n_blocks:]
    z = jnp.maximum(h * s + t, 0.0)
    out = dot(z, wh) + bh
    return out[:, :dims["d_out"]]


if __name__ == "__main__":
    key = jax.random.PRNGKey(0)
    B, d_in, n_blocks, d_main, d_hidden, d_out = 32, 16, 2, 32, 64, 4

    kx, kp = jax.random.split(key)
    x = jax.random.normal(kx, (B, d_in), jnp.float32)
    params = make_params(kp, d_in=d_in, n_blocks=n_blocks, d_main=d_main,
                         d_hidden=d_hidden, d_out=d_out)
    flat, dims = prepare_params(params, n_blocks)

    y = resnet_forward(x, flat, dims, n_blocks)
    y = jax.block_until_ready(y)

    y_ref = resnet_reference(x, flat, dims, n_blocks)
    assert y.shape == (B, d_out)
    assert jnp.allclose(y, y_ref, atol=5e-3, rtol=5e-3), float(jnp.max(jnp.abs(y - y_ref)))
    print("KERNEL_OK")
</pallas_src>

<mosaic_0001>
module attributes {stable_mosaic.version = 11 : i64} {
  func.func @kernel(%arg0: i32, %arg1: memref<32x128xf32, #tpu.memory_space<vmem>>, %arg2: memref<128x128xbf16, #tpu.memory_space<vmem>>, %arg3: memref<1x128xf32, #tpu.memory_space<vmem>>, %arg4: memref<128x128xbf16, #tpu.memory_space<vmem>>, %arg5: memref<1x128xf32, #tpu.memory_space<vmem>>, %arg6: memref<128x128xbf16, #tpu.memory_space<vmem>>, %arg7: memref<1x128xf32, #tpu.memory_space<vmem>>, %arg8: memref<128x128xbf16, #tpu.memory_space<vmem>>, %arg9: memref<1x128xf32, #tpu.memory_space<vmem>>, %arg10: memref<128x128xbf16, #tpu.memory_space<vmem>>, %arg11: memref<1x128xf32, #tpu.memory_space<vmem>>, %arg12: memref<1x128xf32, #tpu.memory_space<vmem>>, %arg13: memref<1x128xf32, #tpu.memory_space<vmem>>, %arg14: memref<128x128xbf16, #tpu.memory_space<vmem>>, %arg15: memref<1x128xf32, #tpu.memory_space<vmem>>, %arg16: memref<32x128xf32, #tpu.memory_space<vmem>>) attributes {dimension_semantics = [#tpu.dimension_semantics<parallel>], iteration_bounds = array<i64: 1>, scalar_prefetch = 0 : i64, scratch_operands = 0 : i64, tpu.core_type = #tpu.core_type<tc>, window_params = [{transform_indices = @transform_0, window_bounds = array<i64: 32, 128>}, {pipeline_mode = #tpu.pipeline_mode<synchronous>, transform_indices = @transform_1, window_bounds = array<i64: 128, 128>}, {pipeline_mode = #tpu.pipeline_mode<synchronous>, transform_indices = @transform_2, window_bounds = array<i64: 1, 128>}, {pipeline_mode = #tpu.pipeline_mode<synchronous>, transform_indices = @transform_3, window_bounds = array<i64: 128, 128>}, {pipeline_mode = #tpu.pipeline_mode<synchronous>, transform_indices = @transform_4, window_bounds = array<i64: 1, 128>}, {pipeline_mode = #tpu.pipeline_mode<synchronous>, transform_indices = @transform_5, window_bounds = array<i64: 128, 128>}, {pipeline_mode = #tpu.pipeline_mode<synchronous>, transform_indices = @transform_6, window_bounds = array<i64: 1, 128>}, {pipeline_mode = #tpu.pipeline_mode<synchronous>, transform_indices = @transform_7, window_bounds = array<i64: 128, 128>}, {pipeline_mode = #tpu.pipeline_mode<synchronous>, transform_indices = @transform_8, window_bounds = array<i64: 1, 128>}, {pipeline_mode = #tpu.pipeline_mode<synchronous>, transform_indices = @transform_9, window_bounds = array<i64: 128, 128>}, {pipeline_mode = #tpu.pipeline_mode<synchronous>, transform_indices = @transform_10, window_bounds = array<i64: 1, 128>}, {pipeline_mode = #tpu.pipeline_mode<synchronous>, transform_indices = @transform_11, window_bounds = array<i64: 1, 128>}, {pipeline_mode = #tpu.pipeline_mode<synchronous>, transform_indices = @transform_12, window_bounds = array<i64: 1, 128>}, {pipeline_mode = #tpu.pipeline_mode<synchronous>, transform_indices = @transform_13, window_bounds = array<i64: 128, 128>}, {pipeline_mode = #tpu.pipeline_mode<synchronous>, transform_indices = @transform_14, window_bounds = array<i64: 1, 128>}, {transform_indices = @transform_15, window_bounds = array<i64: 32, 128>}]} {
    %c0 = arith.constant 0 : index
    %c0_0 = arith.constant 0 : index
    %0 = vector.load %arg1[%c0, %c0_0] : memref<32x128xf32, #tpu.memory_space<vmem>>, vector<32x128xf32>
    %1 = arith.truncf %0 : vector<32x128xf32> to vector<32x128xbf16>
    %c0_1 = arith.constant 0 : index
    %c0_2 = arith.constant 0 : index
    %2 = vector.load %arg2[%c0_1, %c0_2] : memref<128x128xbf16, #tpu.memory_space<vmem>>, vector<128x128xbf16>
    %cst = arith.constant dense<0.000000e+00> : vector<32x128xf32>
    %3 = tpu.matmul %1, %2, %cst {dimension_numbers = #tpu.dot_dimension_numbers<[1], [0], [0], [1], [0, 0, 1, 1], [], []>} : vector<32x128xbf16>, vector<128x128xbf16>, vector<32x128xf32> -> vector<32x128xf32>
    %c0_3 = arith.constant 0 : index
    %c0_4 = arith.constant 0 : index
    %4 = vector.load %arg3[%c0_3, %c0_4] : memref<1x128xf32, #tpu.memory_space<vmem>>, vector<1x128xf32>
    %5 = vector.broadcast %4 : vector<1x128xf32> to vector<32x128xf32>
    %6 = arith.addf %3, %5 : vector<32x128xf32>
    %7 = arith.truncf %6 : vector<32x128xf32> to vector<32x128xbf16>
    %c0_5 = arith.constant 0 : index
    %c0_6 = arith.constant 0 : index
    %8 = vector.load %arg4[%c0_5, %c0_6] : memref<128x128xbf16, #tpu.memory_space<vmem>>, vector<128x128xbf16>
    %cst_7 = arith.constant dense<0.000000e+00> : vector<32x128xf32>
    %9 = tpu.matmul %7, %8, %cst_7 {dimension_numbers = #tpu.dot_dimension_numbers<[1], [0], [0], [1], [0, 0, 1, 1], [], []>} : vector<32x128xbf16>, vector<128x128xbf16>, vector<32x128xf32> -> vector<32x128xf32>
    %c0_8 = arith.constant 0 : index
    %c0_9 = arith.constant 0 : index
    %10 = vector.load %arg5[%c0_8, %c0_9] : memref<1x128xf32, #tpu.memory_space<vmem>>, vector<1x128xf32>
    %11 = vector.broadcast %10 : vector<1x128xf32> to vector<32x128xf32>
    %12 = arith.addf %9, %11 : vector<32x128xf32>
    %cst_10 = arith.constant 0.000000e+00 : f32
    %13 = vector.broadcast %cst_10 : f32 to vector<32x128xf32>
    %14 = arith.maximumf %12, %13 : vector<32x128xf32>
    %15 = arith.truncf %14 : vector<32x128xf32> to vector<32x128xbf16>
    %c0_11 = arith.constant 0 : index
    %c0_12 = arith.constant 0 : index
    %16 = vector.load %arg6[%c0_11, %c0_12] : memref<128x128xbf16, #tpu.memory_space<vmem>>, vector<128x128xbf16>
    %cst_13 = arith.constant dense<0.000000e+00> : vector<32x128xf32>
    %17 = tpu.matmul %15, %16, %cst_13 {dimension_numbers = #tpu.dot_dimension_numbers<[1], [0], [0], [1], [0, 0, 1, 1], [], []>} : vector<32x128xbf16>, vector<128x128xbf16>, vector<32x128xf32> -> vector<32x128xf32>
    %c0_14 = arith.constant 0 : index
    %c0_15 = arith.constant 0 : index
    %18 = vector.load %arg7[%c0_14, %c0_15] : memref<1x128xf32, #tpu.memory_space<vmem>>, vector<1x128xf32>
    %19 = vector.broadcast %18 : vector<1x128xf32> to vector<32x128xf32>
    %20 = arith.addf %17, %19 : vector<32x128xf32>
    %21 = arith.addf %6, %20 : vector<32x128xf32>
    %22 = arith.truncf %21 : vector<32x128xf32> to vector<32x128xbf16>
    %c0_16 = arith.constant 0 : index
    %c0_17 = arith.constant 0 : index
    %23 = vector.load %arg8[%c0_16, %c0_17] : memref<128x128xbf16, #tpu.memory_space<vmem>>, vector<128x128xbf16>
    %cst_18 = arith.constant dense<0.000000e+00> : vector<32x128xf32>
    %24 = tpu.matmul %22, %23, %cst_18 {dimension_numbers = #tpu.dot_dimension_numbers<[1], [0], [0], [1], [0, 0, 1, 1], [], []>} : vector<32x128xbf16>, vector<128x128xbf16>, vector<32x128xf32> -> vector<32x128xf32>
    %c0_19 = arith.constant 0 : index
    %c0_20 = arith.constant 0 : index
    %25 = vector.load %arg9[%c0_19, %c0_20] : memref<1x128xf32, #tpu.memory_space<vmem>>, vector<1x128xf32>
    %26 = vector.broadcast %25 : vector<1x128xf32> to vector<32x128xf32>
    %27 = arith.addf %24, %26 : vector<32x128xf32>
    %cst_21 = arith.constant 0.000000e+00 : f32
    %28 = vector.broadcast %cst_21 : f32 to vector<32x128xf32>
    %29 = arith.maximumf %27, %28 : vector<32x128xf32>
    %30 = arith.truncf %29 : vector<32x128xf32> to vector<32x128xbf16>
    %c0_22 = arith.constant 0 : index
    %c0_23 = arith.constant 0 : index
    %31 = vector.load %arg10[%c0_22, %c0_23] : memref<128x128xbf16, #tpu.memory_space<vmem>>, vector<128x128xbf16>
    %cst_24 = arith.constant dense<0.000000e+00> : vector<32x128xf32>
    %32 = tpu.matmul %30, %31, %cst_24 {dimension_numbers = #tpu.dot_dimension_numbers<[1], [0], [0], [1], [0, 0, 1, 1], [], []>} : vector<32x128xbf16>, vector<128x128xbf16>, vector<32x128xf32> -> vector<32x128xf32>
    %c0_25 = arith.constant 0 : index
    %c0_26 = arith.constant 0 : index
    %33 = vector.load %arg11[%c0_25, %c0_26] : memref<1x128xf32, #tpu.memory_space<vmem>>, vector<1x128xf32>
    %34 = vector.broadcast %33 : vector<1x128xf32> to vector<32x128xf32>
    %35 = arith.addf %32, %34 : vector<32x128xf32>
    %36 = arith.addf %21, %35 : vector<32x128xf32>
    %c0_27 = arith.constant 0 : index
    %c0_28 = arith.constant 0 : index
    %37 = vector.load %arg12[%c0_27, %c0_28] : memref<1x128xf32, #tpu.memory_space<vmem>>, vector<1x128xf32>
    %38 = vector.broadcast %37 : vector<1x128xf32> to vector<32x128xf32>
    %39 = arith.mulf %36, %38 : vector<32x128xf32>
    %c0_29 = arith.constant 0 : index
    %c0_30 = arith.constant 0 : index
    %40 = vector.load %arg13[%c0_29, %c0_30] : memref<1x128xf32, #tpu.memory_space<vmem>>, vector<1x128xf32>
    %41 = vector.broadcast %40 : vector<1x128xf32> to vector<32x128xf32>
    %42 = arith.addf %39, %41 : vector<32x128xf32>
    %cst_31 = arith.constant 0.000000e+00 : f32
    %43 = vector.broadcast %cst_31 : f32 to vector<32x128xf32>
    %44 = arith.maximumf %42, %43 : vector<32x128xf32>
    %45 = arith.truncf %44 : vector<32x128xf32> to vector<32x128xbf16>
    %c0_32 = arith.constant 0 : index
    %c0_33 = arith.constant 0 : index
    %46 = vector.load %arg14[%c0_32, %c0_33] : memref<128x128xbf16, #tpu.memory_space<vmem>>, vector<128x128xbf16>
    %cst_34 = arith.constant dense<0.000000e+00> : vector<32x128xf32>
    %47 = tpu.matmul %45, %46, %cst_34 {dimension_numbers = #tpu.dot_dimension_numbers<[1], [0], [0], [1], [0, 0, 1, 1], [], []>} : vector<32x128xbf16>, vector<128x128xbf16>, vector<32x128xf32> -> vector<32x128xf32>
    %c0_35 = arith.constant 0 : index
    %c0_36 = arith.constant 0 : index
    %48 = vector.load %arg15[%c0_35, %c0_36] : memref<1x128xf32, #tpu.memory_space<vmem>>, vector<1x128xf32>
    %49 = vector.broadcast %48 : vector<1x128xf32> to vector<32x128xf32>
    %50 = arith.addf %47, %49 : vector<32x128xf32>
    %c0_37 = arith.constant 0 : index
    %c0_38 = arith.constant 0 : index
    %51 = vector.load %arg16[%c0_37, %c0_38] : memref<32x128xf32, #tpu.memory_space<vmem>>, vector<32x128xf32>
    tpu.vector_store %arg16[%c0_37, %c0_38], %50 {strides = array<i32>} : memref<32x128xf32, #tpu.memory_space<vmem>>, vector<32x128xf32>,
    return
  }
  func.func @transform_0(%arg0: i32) -> (i32, i32) {
    %c0_i32 = arith.constant 0 : i32
    %c0_i32_0 = arith.constant 0 : i32
    return %arg0, %c0_i32 : i32, i32
  }
  func.func @transform_1(%arg0: i32) -> (i32, i32) {
    %c0_i32 = arith.constant 0 : i32
    %c0_i32_0 = arith.constant 0 : i32
    %c0_i32_1 = arith.constant 0 : i32
    return %c0_i32, %c0_i32_0 : i32, i32
  }
  func.func @transform_2(%arg0: i32) -> (i32, i32) {
    %c0_i32 = arith.constant 0 : i32
    %c0_i32_0 = arith.constant 0 : i32
    %c0_i32_1 = arith.constant 0 : i32
    return %c0_i32, %c0_i32_0 : i32, i32
  }
  func.func @transform_3(%arg0: i32) -> (i32, i32) {
    %c0_i32 = arith.constant 0 : i32
    %c0_i32_0 = arith.constant 0 : i32
    %c0_i32_1 = arith.constant 0 : i32
    return %c0_i32, %c0_i32_0 : i32, i32
  }
  func.func @transform_4(%arg0: i32) -> (i32, i32) {
    %c0_i32 = arith.constant 0 : i32
    %c0_i32_0 = arith.constant 0 : i32
    %c0_i32_1 = arith.constant 0 : i32
    return %c0_i32, %c0_i32_0 : i32, i32
  }
  func.func @transform_5(%arg0: i32) -> (i32, i32) {
    %c0_i32 = arith.constant 0 : i32
    %c0_i32_0 = arith.constant 0 : i32
    %c0_i32_1 = arith.constant 0 : i32
    return %c0_i32, %c0_i32_0 : i32, i32
  }
  func.func @transform_6(%arg0: i32) -> (i32, i32) {
    %c0_i32 = arith.constant 0 : i32
    %c0_i32_0 = arith.constant 0 : i32
    %c0_i32_1 = arith.constant 0 : i32
    return %c0_i32, %c0_i32_0 : i32, i32
  }
  func.func @transform_7(%arg0: i32) -> (i32, i32) {
    %c0_i32 = arith.constant 0 : i32
    %c0_i32_0 = arith.constant 0 : i32
    %c0_i32_1 = arith.constant 0 : i32
    return %c0_i32, %c0_i32_0 : i32, i32
  }
  func.func @transform_8(%arg0: i32) -> (i32, i32) {
    %c0_i32 = arith.constant 0 : i32
    %c0_i32_0 = arith.constant 0 : i32
    %c0_i32_1 = arith.constant 0 : i32
    return %c0_i32, %c0_i32_0 : i32, i32
  }
  func.func @transform_9(%arg0: i32) -> (i32, i32) {
    %c0_i32 = arith.constant 0 : i32
    %c0_i32_0 = arith.constant 0 : i32
    %c0_i32_1 = arith.constant 0 : i32
    return %c0_i32, %c0_i32_0 : i32, i32
  }
  func.func @transform_10(%arg0: i32) -> (i32, i32) {
    %c0_i32 = arith.constant 0 : i32
    %c0_i32_0 = arith.constant 0 : i32
    %c0_i32_1 = arith.constant 0 : i32
    return %c0_i32, %c0_i32_0 : i32, i32
  }
  func.func @transform_11(%arg0: i32) -> (i32, i32) {
    %c0_i32 = arith.constant 0 : i32
    %c0_i32_0 = arith.constant 0 : i32
    %c0_i32_1 = arith.constant 0 : i32
    return %c0_i32, %c0_i32_0 : i32, i32
  }
  func.func @transform_12(%arg0: i32) -> (i32, i32) {
    %c0_i32 = arith.constant 0 : i32
    %c0_i32_0 = arith.constant 0 : i32
    %c0_i32_1 = arith.constant 0 : i32
    return %c0_i32, %c0_i32_0 : i32, i32
  }
  func.func @transform_13(%arg0: i32) -> (i32, i32) {
    %c0_i32 = arith.constant 0 : i32
    %c0_i32_0 = arith.constant 0 : i32
    %c0_i32_1 = arith.constant 0 : i32
    return %c0_i32, %c0_i32_0 : i32, i32
  }
  func.func @transform_14(%arg0: i32) -> (i32, i32) {
    %c0_i32 = arith.constant 0 : i32
    %c0_i32_0 = arith.constant 0 : i32
    %c0_i32_1 = arith.constant 0 : i32
    return %c0_i32, %c0_i32_0 : i32, i32
  }
  func.func @transform_15(%arg0: i32) -> (i32, i32) {
    %c0_i32 = arith.constant 0 : i32
    %c0_i32_0 = arith.constant 0 : i32
    return %arg0, %c0_i32 : i32, i32
  }
}

</mosaic_0001>

<llo_original>
// kernel: tpu_custom_call.1
$region0: #{tpu_custom_call.1}
  #allocation0 [shape = 'u32[]', space=smem, size = 0x4, offset = 0x4, fixed_abs, tag = 'smem constant byte address 0x4 - core index']
  #allocation1 [shape = 'u32[144,128]{1,0:T(1,128)}', space=vmem, size = 0x12000, scoped, tag = 'internal scratch']
  %s0 = inlined_call_operand.hbm [shape: f32[32,128], index: 0, kind: input, shape index: {}]
  %s1 = inlined_call_operand.hbm [shape: bf16[128,128], index: 1, kind: input, shape index: {}]
  %s2 = inlined_call_operand.vmem [shape: f32[1,128], index: 2, kind: input, shape index: {}]
  %s3 = inlined_call_operand.hbm [shape: bf16[128,128], index: 3, kind: input, shape index: {}]
  %s4 = inlined_call_operand.vmem [shape: f32[1,128], index: 4, kind: input, shape index: {}]
  %s5 = inlined_call_operand.hbm [shape: bf16[128,128], index: 5, kind: input, shape index: {}]
  %s6 = inlined_call_operand.vmem [shape: f32[1,128], index: 6, kind: input, shape index: {}]
  %s7 = inlined_call_operand.hbm [shape: bf16[128,128], index: 7, kind: input, shape index: {}]
  %s8 = inlined_call_operand.vmem [shape: f32[1,128], index: 8, kind: input, shape index: {}]
  %s9 = inlined_call_operand.hbm [shape: bf16[128,128], index: 9, kind: input, shape index: {}]
  %s10 = inlined_call_operand.vmem [shape: f32[1,128], index: 10, kind: input, shape index: {}]
  %s11 = inlined_call_operand.vmem [shape: f32[1,128], index: 11, kind: input, shape index: {}]
  %s12 = inlined_call_operand.vmem [shape: f32[1,128], index: 12, kind: input, shape index: {}]
  %s13 = inlined_call_operand.hbm [shape: bf16[128,128], index: 13, kind: input, shape index: {}]
  %s14 = inlined_call_operand.vmem [shape: f32[1,128], index: 14, kind: input, shape index: {}]
  %s15 = inlined_call_operand.hbm [shape: f32[32,128], index: 15, kind: output, shape index: {}]
  %s16 = sld [smem:[#allocation0]]
  $region98: #{tpu_custom_call.1} parent=0
    _
  %s18 = ssub.s32 1, %s16
  %s19 = scalar_select 0, %s18, %s16
  $region1: #{tpu_custom_call.1} parent=0
    #allocation2 [shape = 'u8[16384]{0}', space=vmem, size = 0x4000, scoped, tag = 'input window, operand 0, single buffered']
    #allocation3 [shape = 's32[1]{0}', space=sflag, size = 0x4, scoped, tag = 'scoped memory for tpu_custom_call.1']
    #allocation4 [shape = 's32[1]{0}', space=sflag, size = 0x4, scoped, tag = 'scoped memory for tpu_custom_call.1']
    #allocation5 [shape = 'u8[32768]{0}', space=vmem, size = 0x8000, scoped, tag = 'input window, operand 1, single buffered']
    #allocation6 [shape = 's32[1]{0}', space=sflag, size = 0x4, scoped, tag = 'scoped memory for tpu_custom_call.1']
    #allocation7 [shape = 'u8[32768]{0}', space=vmem, size = 0x8000, scoped, tag = 'input window, operand 3, single buffered']
    #allocation8 [shape = 'u8[32768]{0}', space=vmem, size = 0x8000, scoped, tag = 'input window, operand 5, single buffered']
    #allocation9 [shape = 's32[1]{0}', space=sflag, size = 0x4, scoped, tag = 'scoped memory for tpu_custom_call.1']
    #allocation10 [shape = 'u8[32768]{0}', space=vmem, size = 0x8000, scoped, tag = 'input window, operand 7, single buffered']
    #allocation11 [shape = 'u8[32768]{0}', space=vmem, size = 0x8000, scoped, tag = 'input window, operand 9, single buffered']
    #allocation12 [shape = 's32[1]{0}', space=sflag, size = 0x4, scoped, tag = 'scoped memory for tpu_custom_call.1']
    #allocation13 [shape = 'u8[32768]{0}', space=vmem, size = 0x8000, scoped, tag = 'input window, operand 13, single buffered']
    #allocation14 [shape = 'u8[16384]{0}', space=vmem, size = 0x4000, scoped, tag = 'output window, operand 0, single buffered']
    %20 = vsyncpa [#allocation3], 0
    %21 = vsyncpa [#allocation6], 0
    %22 = vsyncpa [#allocation9], 0
    %23 = vsyncpa [#allocation12], 0
    %24 = vsyncpa [#allocation4], 0
    // Predicated region
    $region2: #{tpu_custom_call.1} parent=1 // pred_check
      _
    $region3: #{tpu_custom_call.1} parent=1 // pred_check_branch
      %26 = sbr.rel (0) target = $region5
    $region4: #{tpu_custom_call.1} parent=1 // pred_region
      %s28 = ssub.s32 512, 512
      %29 = vsyncadd [#allocation3], %s28
      %s30 = sshll.u32 [#allocation2], 4
      %s31 = int_to_ptr.vmem [resolvable:$true] %s30
      %36 = dma.hbm_to_vmem [thread:$0]  %s0, 512, %s31, [#allocation3], 128, 128, 8
    $region5: #{tpu_custom_call.1} parent=1 // pred_fallthru
      _
    // Predicated region
    $region6: #{tpu_custom_call.1} parent=1 // pred_check
      _
    $region7: #{tpu_custom_call.1} parent=1 // pred_check_branch
      %38 = sbr.rel (0) target = $region9
    $region8: #{tpu_custom_call.1} parent=1 // pred_region
      %s40 = ssub.s32 1024, 1024
      %41 = vsyncadd [#allocation6], %s40
      %s42 = sshll.u32 [#allocation5], 4
      %s43 = int_to_ptr.vmem [resolvable:$true] %s42
      %48 = dma.hbm_to_vmem [thread:$0]  %s1, 1024, %s43, [#allocation6], 64, 64, 4
    $region9: #{tpu_custom_call.1} parent=1 // pred_fallthru
      _
    // Predicated region
    $region10: #{tpu_custom_call.1} parent=1 // pred_check
      _
    $region11: #{tpu_custom_call.1} parent=1 // pred_check_branch
      %50 = sbr.rel (0) target = $region13
    $region12: #{tpu_custom_call.1} parent=1 // pred_region
      _
    $region13: #{tpu_custom_call.1} parent=1 // pred_fallthru
      _
    // Predicated region
    $region14: #{tpu_custom_call.1} parent=1 // pred_check
      _
    $region15: #{tpu_custom_call.1} parent=1 // pred_check_branch
      %52 = sbr.rel (0) target = $region17
    $region16: #{tpu_custom_call.1} parent=1 // pred_region
      %s54 = ssub.s32 1024, 1024
      %55 = vsyncadd [#allocation6], %s54
      %s56 = sshll.u32 [#allocation7], 4
      %s57 = int_to_ptr.vmem [resolvable:$true] %s56
      %62 = dma.hbm_to_vmem [thread:$0]  %s3, 1024, %s57, [#allocation6], 64, 64, 4
    $region17: #{tpu_custom_call.1} parent=1 // pred_fallthru
      _
    // Predicated region
    $region18: #{tpu_custom_call.1} parent=1 // pred_check
      _
    $region19: #{tpu_custom_call.1} parent=1 // pred_check_branch
      %64 = sbr.rel (0) target = $region21
    $region20: #{tpu_custom_call.1} parent=1 // pred_region
      _
    $region21: #{tpu_custom_call.1} parent=1 // pred_fallthru
      _
    // Predicated region
    $region22: #{tpu_custom_call.1} parent=1 // pred_check
      _
    $region23: #{tpu_custom_call.1} parent=1 // pred_check_branch
      %66 = sbr.rel (0) target = $region25
    $region24: #{tpu_custom_call.1} parent=1 // pred_region
      %s68 = ssub.s32 1024, 1024
      %69 = vsyncadd [#allocation9], %s68
      %s70 = sshll.u32 [#allocation8], 4
      %s71 = int_to_ptr.vmem [resolvable:$true] %s70
      %76 = dma.hbm_to_vmem [thread:$0]  %s5, 1024, %s71, [#allocation9], 64, 64, 4
    $region25: #{tpu_custom_call.1} parent=1 // pred_fallthru
      _
    // Predicated region
    $region26: #{tpu_custom_call.1} parent=1 // pred_check
      _
    $region27: #{tpu_custom_call.1} parent=1 // pred_check_branch
      %78 = sbr.rel (0) target = $region29
    $region28: #{tpu_custom_call.1} parent=1 // pred_region
      _
    $region29: #{tpu_custom_call.1} parent=1 // pred_fallthru
      _
    // Predicated region
    $region30: #{tpu_custom_call.1} parent=1 // pred_check
      _
    $region31: #{tpu_custom_call.1} parent=1 // pred_check_branch
      %80 = sbr.rel (0) target = $region33
    $region32: #{tpu_custom_call.1} parent=1 // pred_region
      %s82 = ssub.s32 1024, 1024
      %83 = vsyncadd [#allocation9], %s82
      %s84 = sshll.u32 [#allocation10], 4
      %s85 = int_to_ptr.vmem [resolvable:$true] %s84
      %90 = dma.hbm_to_vmem [thread:$0]  %s7, 1024, %s85, [#allocation9], 64, 64, 4
    $region33: #{tpu_custom_call.1} parent=1 // pred_fallthru
      _
    // Predicated region
    $region34: #{tpu_custom_call.1} parent=1 // pred_check
      _
    $region35: #{tpu_custom_call.1} parent=1 // pred_check_branch
      %92 = sbr.rel (0) target = $region37
    $region36: #{tpu_custom_call.1} parent=1 // pred_region
      _
    $region37: #{tpu_custom_call.1} parent=1 // pred_fallthru
      _
    // Predicated region
    $region38: #{tpu_custom_call.1} parent=1 // pred_check
      _
    $region39: #{tpu_custom_call.1} parent=1 // pred_check_branch
      %94 = sbr.rel (0) target = $region41
    $region40: #{tpu_custom_call.1} parent=1 // pred_region
      %s96 = ssub.s32 1024, 1024
      %97 = vsyncadd [#allocation12], %s96
      %s98 = sshll.u32 [#allocation11], 4
      %s99 = int_to_ptr.vmem [resolvable:$true] %s98
      %104 = dma.hbm_to_vmem [thread:$0]  %s9, 1024, %s99, [#allocation12], 64, 64, 4
    $region41: #{tpu_custom_call.1} parent=1 // pred_fallthru
      _
    // Predicated region
    $region42: #{tpu_custom_call.1} parent=1 // pred_check
      _
    $region43: #{tpu_custom_call.1} parent=1 // pred_check_branch
      %106 = sbr.rel (0) target = $region45
    $region44: #{tpu_custom_call.1} parent=1 // pred_region
      _
    $region45: #{tpu_custom_call.1} parent=1 // pred_fallthru
      _
    // Predicated region
    $region46: #{tpu_custom_call.1} parent=1 // pred_check
      _
    $region47: #{tpu_custom_call.1} parent=1 // pred_check_branch
      %108 = sbr.rel (0) target = $region49
    $region48: #{tpu_custom_call.1} parent=1 // pred_region
      _
    $region49: #{tpu_custom_call.1} parent=1 // pred_fallthru
      _
    // Predicated region
    $region50: #{tpu_custom_call.1} parent=1 // pred_check
      _
    $region51: #{tpu_custom_call.1} parent=1 // pred_check_branch
      %110 = sbr.rel (0) target = $region53
    $region52: #{tpu_custom_call.1} parent=1 // pred_region
      _
    $region53: #{tpu_custom_call.1} parent=1 // pred_fallthru
      _
    // Predicated region
    $region54: #{tpu_custom_call.1} parent=1 // pred_check
      _
    $region55: #{tpu_custom_call.1} parent=1 // pred_check_branch
      %112 = sbr.rel (0) target = $region57
    $region56: #{tpu_custom_call.1} parent=1 // pred_region
      %s114 = ssub.s32 1024, 1024
      %115 = vsyncadd [#allocation12], %s114
      %s116 = sshll.u32 [#allocation13], 4
      %s117 = int_to_ptr.vmem [resolvable:$true] %s116
      %122 = dma.hbm_to_vmem [thread:$0]  %s13, 1024, %s117, [#allocation12], 64, 64, 4
    $region57: #{tpu_custom_call.1} parent=1 // pred_fallthru
      _
    // Predicated region
    $region58: #{tpu_custom_call.1} parent=1 // pred_check
      _
    $region59: #{tpu_custom_call.1} parent=1 // pred_check_branch
      %124 = sbr.rel (0) target = $region61
    $region60: #{tpu_custom_call.1} parent=1 // pred_region
      _
    $region61: #{tpu_custom_call.1} parent=1 // pred_fallthru
      _
    // Predicated region
    $region62: #{tpu_custom_call.1} parent=1 // pred_check
      _
    $region63: #{tpu_custom_call.1} parent=1 // pred_check_branch
      %126 = sbr.rel (0) target = $region65
    $region64: #{tpu_custom_call.1} parent=1 // pred_region
      %127 = dma.done [#allocation3], 512
    $region65: #{tpu_custom_call.1} parent=1 // pred_fallthru
      _
    // Predicated region
    $region66: #{tpu_custom_call.1} parent=1 // pred_check
      _
    $region67: #{tpu_custom_call.1} parent=1 // pred_check_branch
      %129 = sbr.rel (0) target = $region69
    $region68: #{tpu_custom_call.1} parent=1 // pred_region
      %130 = dma.done [#allocation6], 1024
    $region69: #{tpu_custom_call.1} parent=1 // pred_fallthru
      _
    // Predicated region
    $region70: #{tpu_custom_call.1} parent=1 // pred_check
      _
    $region71: #{tpu_custom_call.1} parent=1 // pred_check_branch
      %132 = sbr.rel (0) target = $region73
    $region72: #{tpu_custom_call.1} parent=1 // pred_region
      %133 = dma.done [#allocation6], 1024
    $region73: #{tpu_custom_call.1} parent=1 // pred_fallthru
      _
    // Predicated region
    $region74: #{tpu_custom_call.1} parent=1 // pred_check
      _
    $region75: #{tpu_custom_call.1} parent=1 // pred_check_branch
      %135 = sbr.rel (0) target = $region77
    $region76: #{tpu_custom_call.1} parent=1 // pred_region
      %136 = dma.done [#allocation9], 1024
    $region77: #{tpu_custom_call.1} parent=1 // pred_fallthru
      _
    // Predicated region
    $region78: #{tpu_custom_call.1} parent=1 // pred_check
      _
    $region79: #{tpu_custom_call.1} parent=1 // pred_check_branch
      %138 = sbr.rel (0) target = $region81
    $region80: #{tpu_custom_call.1} parent=1 // pred_region
      %139 = dma.done [#allocation9], 1024
    $region81: #{tpu_custom_call.1} parent=1 // pred_fallthru
      _
    // Predicated region
    $region82: #{tpu_custom_call.1} parent=1 // pred_check
      _
    $region83: #{tpu_custom_call.1} parent=1 // pred_check_branch
      %141 = sbr.rel (0) target = $region85
    $region84: #{tpu_custom_call.1} parent=1 // pred_region
      %142 = dma.done [#allocation12], 1024
    $region85: #{tpu_custom_call.1} parent=1 // pred_fallthru
      _
    // Predicated region
    $region86: #{tpu_custom_call.1} parent=1 // pred_check
      _
    $region87: #{tpu_custom_call.1} parent=1 // pred_check_branch
      %144 = sbr.rel (0) target = $region89
    $region88: #{tpu_custom_call.1} parent=1 // pred_region
      %145 = dma.done [#allocation12], 1024
    $region89: #{tpu_custom_call.1} parent=1 // pred_fallthru
      _
    %v147 = vld [vmem:[#allocation2] sm:$0xff]
    %v148 = vld [vmem:[#allocation2 + $0x8] sm:$0xff]
    %v149 = vld [vmem:[#allocation2 + $0x10] sm:$0xff]
    %v150 = vld [vmem:[#allocation2 + $0x18] sm:$0xff]
    %v151 = vpack.c.bf16 %v148, %v147
    %v152 = vpack.c.bf16 %v150, %v149
    %v153 = vld [vmem:[#allocation5] sm:$0xf]
    %v154 = vld [vmem:[#allocation5 + $0x4] sm:$0xf]
    %v155 = vld [vmem:[#allocation5 + $0x8] sm:$0xf]
    %v156 = vld [vmem:[#allocation5 + $0xc] sm:$0xf]
    %v157 = vld [vmem:[#allocation5 + $0x10] sm:$0xf]
    %v158 = vld [vmem:[#allocation5 + $0x14] sm:$0xf]
    %v159 = vld [vmem:[#allocation5 + $0x18] sm:$0xf]
    %v160 = vld [vmem:[#allocation5 + $0x1c] sm:$0xf]
    %v161 = vld [vmem:[#allocation5 + $0x20] sm:$0xf]
    %v162 = vld [vmem:[#allocation5 + $0x24] sm:$0xf]
    %v163 = vld [vmem:[#allocation5 + $0x28] sm:$0xf]
    %v164 = vld [vmem:[#allocation5 + $0x2c] sm:$0xf]
    %v165 = vld [vmem:[#allocation5 + $0x30] sm:$0xf]
    %v166 = vld [vmem:[#allocation5 + $0x34] sm:$0xf]
    %v167 = vld [vmem:[#allocation5 + $0x38] sm:$0xf]
    %v168 = vld [vmem:[#allocation5 + $0x3c] sm:$0xf]
    %v169 = vld [vmem:[%s2] sm:$0x1]
    %v171 = vlaneseq
    %v172 = vshrl.u32 %v171, 7
    %v173 = vsub.s32 0, %v172
    %v174 = vrot.slane %v169, %v173
    %v192 = vunpack.c.l.b16 %v153
    %v193 = vunpack.c.l.b16 %v154
    %v194 = vunpack.c.l.b16 %v155
    %v195 = vunpack.c.l.b16 %v156
    %v196 = vunpack.c.l.b16 %v157
    %v197 = vunpack.c.l.b16 %v158
    %v198 = vunpack.c.l.b16 %v159
    %v199 = vunpack.c.l.b16 %v160
    %v200 = vunpack.c.l.b16 %v161
    %v201 = vunpack.c.l.b16 %v162
    %v202 = vunpack.c.l.b16 %v163
    %v203 = vunpack.c.l.b16 %v164
    %v204 = vunpack.c.l.b16 %v165
    %v205 = vunpack.c.l.b16 %v166
    %v206 = vunpack.c.l.b16 %v167
    %v207 = vunpack.c.l.b16 %v168
    %v208 = vpack.c.b16 %v193, %v192
    %v209 = vpack.c.b16 %v195, %v194
    %v210 = vpack.c.b16 %v197, %v196
    %v211 = vpack.c.b16 %v199, %v198
    %v212 = vpack.c.b16 %v201, %v200
    %v213 = vpack.c.b16 %v203, %v202
    %v214 = vpack.c.b16 %v205, %v204
    %v215 = vpack.c.b16 %v207, %v206
    %224 = vmatprep.subr.bf16.mxu0 0
    %225 = vmatpush1.bf16.msra.mxu0 %v208
    %226 = vmatprep.subr.bf16.mxu0 0
    %227 = vmatpush1.bf16.msra.mxu0 %v209
    %228 = vmatprep.subr.bf16.mxu0 0
    %229 = vmatpush1.bf16.msra.mxu0 %v210
    %230 = vmatprep.subr.bf16.mxu0 0
    %231 = vmatpush1.bf16.msra.mxu0 %v211
    %232 = vmatprep.subr.bf16.mxu0 0
    %233 = vmatpush1.bf16.msra.mxu0 %v212
    %234 = vmatprep.subr.bf16.mxu0 0
    %235 = vmatpush1.bf16.msra.mxu0 %v213
    %236 = vmatprep.subr.bf16.mxu0 0
    %237 = vmatpush1.bf16.msra.mxu0 %v214
    %238 = vmatprep.subr.bf16.mxu0 0
    %239 = vmatpush1.bf16.msra.mxu0 %v215
    %240 = vmatprep.subr.bf16.mxu0 0
    %241 = vmatpush1.bf16.msra.mxu0 0
    %242 = vmatprep.subr.bf16.mxu0 0
    %243 = vmatpush1.bf16.msra.mxu0 0
    %244 = vmatprep.subr.bf16.mxu0 0
    %245 = vmatpush1.bf16.msra.mxu0 0
    %246 = vmatprep.subr.bf16.mxu0 0
    %247 = vmatpush1.bf16.msra.mxu0 0
    %248 = vmatprep.subr.bf16.mxu0 0
    %249 = vmatpush1.bf16.msra.mxu0 0
    %250 = vmatprep.subr.bf16.mxu0 0
    %251 = vmatpush1.bf16.msra.mxu0 0
    %252 = vmatprep.subr.bf16.mxu0 0
    %253 = vmatpush1.bf16.msra.mxu0 0
    %254 = vmatprep.subr.bf16.mxu0 0
    %255 = vmatpush1.bf16.msra.mxu0 0
    %256 = vmatprep.mubr.bf16.mxu0 0
    %257 = vmatmul.mubr.bf16.gmra.mrb[0].mxu0 %v151
    %v258 = vpop.f32.mrb[0].mxu0
    %v259 = vadd.f32 %v174, %v258
    %v260 = vpop.f32.mrb[0].mxu0
    %v261 = vpop.f32.mrb[0].mxu0
    %v262 = vadd.f32 %v174, %v261
    %v263 = vpop.f32.mrb[0].mxu0
    %264 = vmatprep.mubr.bf16.mxu0 0
    %265 = vmatmul.mubr.bf16.gmra.mrb[0].mxu0 %v152
    %v266 = vpop.f32.mrb[0].mxu0
    %v267 = vadd.f32 %v174, %v266
    %v268 = vpop.f32.mrb[0].mxu0
    %v269 = vpop.f32.mrb[0].mxu0
    %v270 = vadd.f32 %v174, %v269
    %v271 = vpop.f32.mrb[0].mxu0
    %272 = vdwg.mxu0
    %v273 = vpack.c.bf16 %v262, %v259
    %v274 = vpack.c.bf16 %v270, %v267
    %v275 = vld [vmem:[#allocation7] sm:$0xf]
    %v276 = vld [vmem:[#allocation7 + $0x4] sm:$0xf]
    %v277 = vld [vmem:[#allocation7 + $0x8] sm:$0xf]
    %v278 = vld [vmem:[#allocation7 + $0xc] sm:$0xf]
    %v279 = vld [vmem:[#allocation7 + $0x10] sm:$0xf]
    %v280 = vld [vmem:[#allocation7 + $0x14] sm:$0xf]
    %v281 = vld [vmem:[#allocation7 + $0x18] sm:$0xf]
    %v282 = vld [vmem:[#allocation7 + $0x1c] sm:$0xf]
    %v283 = vld [vmem:[#allocation7 + $0x20] sm:$0xf]
    %v284 = vld [vmem:[#allocation7 + $0x24] sm:$0xf]
    %v285 = vld [vmem:[#allocation7 + $0x28] sm:$0xf]
    %v286 = vld [vmem:[#allocation7 + $0x2c] sm:$0xf]
    %v287 = vld [vmem:[#allocation7 + $0x30] sm:$0xf]
    %v288 = vld [vmem:[#allocation7 + $0x34] sm:$0xf]
    %v289 = vld [vmem:[#allocation7 + $0x38] sm:$0xf]
    %v290 = vld [vmem:[#allocation7 + $0x3c] sm:$0xf]
    %v291 = vld [vmem:[%s4] sm:$0x1]
    %v293 = vlaneseq
    %v294 = vshrl.u32 %v293, 7
    %v295 = vsub.s32 0, %v294
    %v296 = vrot.slane %v291, %v295
    %v314 = vunpack.c.l.b16 %v275
    %v315 = vunpack.c.l.b16 %v276
    %v316 = vunpack.c.l.b16 %v277
    %v317 = vunpack.c.l.b16 %v278
    %v318 = vunpack.c.l.b16 %v279
    %v319 = vunpack.c.l.b16 %v280
    %v320 = vunpack.c.l.b16 %v281
    %v321 = vunpack.c.l.b16 %v282
    %v322 = vunpack.c.l.b16 %v283
    %v323 = vunpack.c.l.b16 %v284
    %v324 = vunpack.c.l.b16 %v285
    %v325 = vunpack.c.l.b16 %v286
    %v326 = vunpack.c.l.b16 %v287
    %v327 = vunpack.c.l.b16 %v288
    %v328 = vunpack.c.l.b16 %v289
    %v329 = vunpack.c.l.b16 %v290
    %v330 = vpack.c.b16 %v315, %v314
    %v331 = vpack.c.b16 %v317, %v316
    %v332 = vpack.c.b16 %v319, %v318
    %v333 = vpack.c.b16 %v321, %v320
    %v334 = vpack.c.b16 %v323, %v322
    %v335 = vpack.c.b16 %v325, %v324
    %v336 = vpack.c.b16 %v327, %v326
    %v337 = vpack.c.b16 %v329, %v328
    %346 = vmatprep.subr.bf16.mxu0 0
    %347 = vmatpush1.bf16.msra.mxu0 %v330
    %348 = vmatprep.subr.bf16.mxu0 0
    %349 = vmatpush1.bf16.msra.mxu0 %v331
    %350 = vmatprep.subr.bf16.mxu0 0
    %351 = vmatpush1.bf16.msra.mxu0 %v332
    %352 = vmatprep.subr.bf16.mxu0 0
    %353 = vmatpush1.bf16.msra.mxu0 %v333
    %354 = vmatprep.subr.bf16.mxu0 0
    %355 = vmatpush1.bf16.msra.mxu0 %v334
    %356 = vmatprep.subr.bf16.mxu0 0
    %357 = vmatpush1.bf16.msra.mxu0 %v335
    %358 = vmatprep.subr.bf16.mxu0 0
    %359 = vmatpush1.bf16.msra.mxu0 %v336
    %360 = vmatprep.subr.bf16.mxu0 0
    %361 = vmatpush1.bf16.msra.mxu0 %v337
    %362 = vmatprep.subr.bf16.mxu0 0
    %363 = vmatpush1.bf16.msra.mxu0 0
    %364 = vmatprep.subr.bf16.mxu0 0
    %365 = vmatpush1.bf16.msra.mxu0 0
    %366 = vmatprep.subr.bf16.mxu0 0
    %367 = vmatpush1.bf16.msra.mxu0 0
    %368 = vmatprep.subr.bf16.mxu0 0
    %369 = vmatpush1.bf16.msra.mxu0 0
    %370 = vmatprep.subr.bf16.mxu0 0
    %371 = vmatpush1.bf16.msra.mxu0 0
    %372 = vmatprep.subr.bf16.mxu0 0
    %373 = vmatpush1.bf16.msra.mxu0 0
    %374 = vmatprep.subr.bf16.mxu0 0
    %375 = vmatpush1.bf16.msra.mxu0 0
    %376 = vmatprep.subr.bf16.mxu0 0
    %377 = vmatpush1.bf16.msra.mxu0 0
    %378 = vmatprep.mubr.bf16.mxu0 0
    %379 = vmatmul.mubr.bf16.gmra.mrb[0].mxu0 %v273
    %v380 = vpop.f32.mrb[0].mxu0
    %v381 = vadd.f32 %v296, %v380
    %v382 = vpop.f32.mrb[0].mxu0
    %v383 = vpop.f32.mrb[0].mxu0
    %v384 = vadd.f32 %v296, %v383
    %v385 = vpop.f32.mrb[0].mxu0
    %386 = vmatprep.mubr.bf16.mxu0 0
    %387 = vmatmul.mubr.bf16.gmra.mrb[0].mxu0 %v274
    %v388 = vpop.f32.mrb[0].mxu0
    %v389 = vadd.f32 %v296, %v388
    %v390 = vpop.f32.mrb[0].mxu0
    %v391 = vpop.f32.mrb[0].mxu0
    %v392 = vadd.f32 %v296, %v391
    %v393 = vpop.f32.mrb[0].mxu0
    %394 = vdwg.mxu0
    %v395 = vmax.f32 %v381, 0.0
    %v396 = vmax.f32 %v384, 0.0
    %v397 = vmax.f32 %v389, 0.0
    %v398 = vmax.f32 %v392, 0.0
    %v399 = vpack.c.bf16 %v396, %v395
    %v400 = vpack.c.bf16 %v398, %v397
    %v401 = vld [vmem:[#allocation8] sm:$0xf]
    %v402 = vld [vmem:[#allocation8 + $0x4] sm:$0xf]
    %v403 = vld [vmem:[#allocation8 + $0x8] sm:$0xf]
    %v404 = vld [vmem:[#allocation8 + $0xc] sm:$0xf]
    %v405 = vld [vmem:[#allocation8 + $0x10] sm:$0xf]
    %v406 = vld [vmem:[#allocation8 + $0x14] sm:$0xf]
    %v407 = vld [vmem:[#allocation8 + $0x18] sm:$0xf]
    %v408 = vld [vmem:[#allocation8 + $0x1c] sm:$0xf]
    %v409 = vld [vmem:[#allocation8 + $0x20] sm:$0xf]
    %v410 = vld [vmem:[#allocation8 + $0x24] sm:$0xf]
    %v411 = vld [vmem:[#allocation8 + $0x28] sm:$0xf]
    %v412 = vld [vmem:[#allocation8 + $0x2c] sm:$0xf]
    %v413 = vld [vmem:[#allocation8 + $0x30] sm:$0xf]
    %v414 = vld [vmem:[#allocation8 + $0x34] sm:$0xf]
    %v415 = vld [vmem:[#allocation8 + $0x38] sm:$0xf]
    %v416 = vld [vmem:[#allocation8 + $0x3c] sm:$0xf]
    %v417 = vld [vmem:[%s6] sm:$0x1]
    %v419 = vlaneseq
    %v420 = vshrl.u32 %v419, 7
    %v421 = vsub.s32 0, %v420
    %v422 = vrot.slane %v417, %v421
    %v440 = vunpack.c.l.b16 %v401
    %v441 = vunpack.c.l.b16 %v402
    %v442 = vunpack.c.l.b16 %v403
    %v443 = vunpack.c.l.b16 %v404
    %v444 = vunpack.c.l.b16 %v405
    %v445 = vunpack.c.l.b16 %v406
    %v446 = vunpack.c.l.b16 %v407
    %v447 = vunpack.c.l.b16 %v408
    %v448 = vunpack.c.l.b16 %v409
    %v449 = vunpack.c.l.b16 %v410
    %v450 = vunpack.c.l.b16 %v411
    %v451 = vunpack.c.l.b16 %v412
    %v452 = vunpack.c.l.b16 %v413
    %v453 = vunpack.c.l.b16 %v414
    %v454 = vunpack.c.l.b16 %v415
    %v455 = vunpack.c.l.b16 %v416
    %v456 = vpack.c.b16 %v441, %v440
    %v457 = vpack.c.b16 %v443, %v442
    %v458 = vpack.c.b16 %v445, %v444
    %v459 = vpack.c.b16 %v447, %v446
    %v460 = vpack.c.b16 %v449, %v448
    %v461 = vpack.c.b16 %v451, %v450
    %v462 = vpack.c.b16 %v453, %v452
    %v463 = vpack.c.b16 %v455, %v454
    %472 = vmatprep.subr.bf16.mxu0 0
    %473 = vmatpush1.bf16.msra.mxu0 %v456
    %474 = vmatprep.subr.bf16.mxu0 0
    %475 = vmatpush1.bf16.msra.mxu0 %v457
    %476 = vmatprep.subr.bf16.mxu0 0
    %477 = vmatpush1.bf16.msra.mxu0 %v458
    %478 = vmatprep.subr.bf16.mxu0 0
    %479 = vmatpush1.bf16.msra.mxu0 %v459
    %480 = vmatprep.subr.bf16.mxu0 0
    %481 = vmatpush1.bf16.msra.mxu0 %v460
    %482 = vmatprep.subr.bf16.mxu0 0
    %483 = vmatpush1.bf16.msra.mxu0 %v461
    %484 = vmatprep.subr.bf16.mxu0 0
    %485 = vmatpush1.bf16.msra.mxu0 %v462
    %486 = vmatprep.subr.bf16.mxu0 0
    %487 = vmatpush1.bf16.msra.mxu0 %v463
    %488 = vmatprep.subr.bf16.mxu0 0
    %489 = vmatpush1.bf16.msra.mxu0 0
    %490 = vmatprep.subr.bf16.mxu0 0
    %491 = vmatpush1.bf16.msra.mxu0 0
    %492 = vmatprep.subr.bf16.mxu0 0
    %493 = vmatpush1.bf16.msra.mxu0 0
    %494 = vmatprep.subr.bf16.mxu0 0
    %495 = vmatpush1.bf16.msra.mxu0 0
    %496 = vmatprep.subr.bf16.mxu0 0
    %497 = vmatpush1.bf16.msra.mxu0 0
    %498 = vmatprep.subr.bf16.mxu0 0
    %499 = vmatpush1.bf16.msra.mxu0 0
    %500 = vmatprep.subr.bf16.mxu0 0
    %501 = vmatpush1.bf16.msra.mxu0 0
    %502 = vmatprep.subr.bf16.mxu0 0
    %503 = vmatpush1.bf16.msra.mxu0 0
    %504 = vmatprep.mubr.bf16.mxu0 0
    %505 = vmatmul.mubr.bf16.gmra.mrb[0].mxu0 %v399
    %v506 = vpop.f32.mrb[0].mxu0
    %v507 = vadd.f32 %v422, %v506
    %v508 = vpop.f32.mrb[0].mxu0
    %v509 = vpop.f32.mrb[0].mxu0
    %v510 = vadd.f32 %v422, %v509
    %v511 = vpop.f32.mrb[0].mxu0
    %512 = vmatprep.mubr.bf16.mxu0 0
    %513 = vmatmul.mubr.bf16.gmra.mrb[0].mxu0 %v400
    %v514 = vpop.f32.mrb[0].mxu0
    %v515 = vadd.f32 %v422, %v514
    %v516 = vpop.f32.mrb[0].mxu0
    %v517 = vpop.f32.mrb[0].mxu0
    %v518 = vadd.f32 %v422, %v517
    %v519 = vpop.f32.mrb[0].mxu0
    %520 = vdwg.mxu0
    %v521 = vadd.f32 %v259, %v507
    %v522 = vadd.f32 %v262, %v510
    %v523 = vadd.f32 %v267, %v515
    %v524 = vadd.f32 %v270, %v518
    %v525 = vpack.c.bf16 %v522, %v521
    %v526 = vpack.c.bf16 %v524, %v523
    %v527 = vld [vmem:[#allocation10] sm:$0xf]
    %v528 = vld [vmem:[#allocation10 + $0x4] sm:$0xf]
    %v529 = vld [vmem:[#allocation10 + $0x8] sm:$0xf]
    %v530 = vld [vmem:[#allocation10 + $0xc] sm:$0xf]
    %v531 = vld [vmem:[#allocation10 + $0x10] sm:$0xf]
    %v532 = vld [vmem:[#allocation10 + $0x14] sm:$0xf]
    %v533 = vld [vmem:[#allocation10 + $0x18] sm:$0xf]
    %v534 = vld [vmem:[#allocation10 + $0x1c] sm:$0xf]
    %v535 = vld [vmem:[#allocation10 + $0x20] sm:$0xf]
    %v536 = vld [vmem:[#allocation10 + $0x24] sm:$0xf]
    %v537 = vld [vmem:[#allocation10 + $0x28] sm:$0xf]
    %v538 = vld [vmem:[#allocation10 + $0x2c] sm:$0xf]
    %v539 = vld [vmem:[#allocation10 + $0x30] sm:$0xf]
    %v540 = vld [vmem:[#allocation10 + $0x34] sm:$0xf]
    %v541 = vld [vmem:[#allocation10 + $0x38] sm:$0xf]
    %v542 = vld [vmem:[#allocation10 + $0x3c] sm:$0xf]
    %v543 = vld [vmem:[%s8] sm:$0x1]
    %v545 = vlaneseq
    %v546 = vshrl.u32 %v545, 7
    %v547 = vsub.s32 0, %v546
    %v548 = vrot.slane %v543, %v547
    %v566 = vunpack.c.l.b16 %v527
    %v567 = vunpack.c.l.b16 %v528
    %v568 = vunpack.c.l.b16 %v529
    %v569 = vunpack.c.l.b16 %v530
    %v570 = vunpack.c.l.b16 %v531
    %v571 = vunpack.c.l.b16 %v532
    %v572 = vunpack.c.l.b16 %v533
    %v573 = vunpack.c.l.b16 %v534
    %v574 = vunpack.c.l.b16 %v535
    %v575 = vunpack.c.l.b16 %v536
    %v576 = vunpack.c.l.b16 %v537
    %v577 = vunpack.c.l.b16 %v538
    %v578 = vunpack.c.l.b16 %v539
    %v579 = vunpack.c.l.b16 %v540
    %v580 = vunpack.c.l.b16 %v541
    %v581 = vunpack.c.l.b16 %v542
    %v582 = vpack.c.b16 %v567, %v566
    %v583 = vpack.c.b16 %v569, %v568
    %v584 = vpack.c.b16 %v571, %v570
    %v585 = vpack.c.b16 %v573, %v572
    %v586 = vpack.c.b16 %v575, %v574
    %v587 = vpack.c.b16 %v577, %v576
    %v588 = vpack.c.b16 %v579, %v578
    %v589 = vpack.c.b16 %v581, %v580
    %598 = vmatprep.subr.bf16.mxu0 0
    %599 = vmatpush1.bf16.msra.mxu0 %v582
    %600 = vmatprep.subr.bf16.mxu0 0
    %601 = vmatpush1.bf16.msra.mxu0 %v583
    %602 = vmatprep.subr.bf16.mxu0 0
    %603 = vmatpush1.bf16.msra.mxu0 %v584
    %604 = vmatprep.subr.bf16.mxu0 0
    %605 = vmatpush1.bf16.msra.mxu0 %v585
    %606 = vmatprep.subr.bf16.mxu0 0
    %607 = vmatpush1.bf16.msra.mxu0 %v586
    %608 = vmatprep.subr.bf16.mxu0 0
    %609 = vmatpush1.bf16.msra.mxu0 %v587
    %610 = vmatprep.subr.bf16.mxu0 0
    %611 = vmatpush1.bf16.msra.mxu0 %v588
    %612 = vmatprep.subr.bf16.mxu0 0
    %613 = vmatpush1.bf16.msra.mxu0 %v589
    %614 = vmatprep.subr.bf16.mxu0 0
    %615 = vmatpush1.bf16.msra.mxu0 0
    %616 = vmatprep.subr.bf16.mxu0 0
    %617 = vmatpush1.bf16.msra.mxu0 0
    %618 = vmatprep.subr.bf16.mxu0 0
    %619 = vmatpush1.bf16.msra.mxu0 0
    %620 = vmatprep.subr.bf16.mxu0 0
    %621 = vmatpush1.bf16.msra.mxu0 0
    %622 = vmatprep.subr.bf16.mxu0 0
    %623 = vmatpush1.bf16.msra.mxu0 0
    %624 = vmatprep.subr.bf16.mxu0 0
    %625 = vmatpush1.bf16.msra.mxu0 0
    %626 = vmatprep.subr.bf16.mxu0 0
    %627 = vmatpush1.bf16.msra.mxu0 0
    %628 = vmatprep.subr.bf16.mxu0 0
    %629 = vmatpush1.bf16.msra.mxu0 0
    %630 = vmatprep.mubr.bf16.mxu0 0
    %631 = vmatmul.mubr.bf16.gmra.mrb[0].mxu0 %v525
    %v632 = vpop.f32.mrb[0].mxu0
    %v633 = vadd.f32 %v548, %v632
    %v634 = vpop.f32.mrb[0].mxu0
    %v635 = vpop.f32.mrb[0].mxu0
    %v636 = vadd.f32 %v548, %v635
    %v637 = vpop.f32.mrb[0].mxu0
    %638 = vmatprep.mubr.bf16.mxu0 0
    %639 = vmatmul.mubr.bf16.gmra.mrb[0].mxu0 %v526
    %v640 = vpop.f32.mrb[0].mxu0
    %v641 = vadd.f32 %v548, %v640
    %v642 = vpop.f32.mrb[0].mxu0
    %v643 = vpop.f32.mrb[0].mxu0
    %v644 = vadd.f32 %v548, %v643
    %v645 = vpop.f32.mrb[0].mxu0
    %646 = vdwg.mxu0
    %v647 = vmax.f32 %v633, 0.0
    %v648 = vmax.f32 %v636, 0.0
    %v649 = vmax.f32 %v641, 0.0
    %v650 = vmax.f32 %v644, 0.0
    %v651 = vpack.c.bf16 %v648, %v647
    %v652 = vpack.c.bf16 %v650, %v649
    %v653 = vld [vmem:[#allocation11] sm:$0xf]
    %v654 = vld [vmem:[#allocation11 + $0x4] sm:$0xf]
    %v655 = vld [vmem:[#allocation11 + $0x8] sm:$0xf]
    %v656 = vld [vmem:[#allocation11 + $0xc] sm:$0xf]
    %v657 = vld [vmem:[#allocation11 + $0x10] sm:$0xf]
    %v658 = vld [vmem:[#allocation11 + $0x14] sm:$0xf]
    %v659 = vld [vmem:[#allocation11 + $0x18] sm:$0xf]
    %v660 = vld [vmem:[#allocation11 + $0x1c] sm:$0xf]
    %v661 = vld [vmem:[#allocation11 + $0x20] sm:$0xf]
    %v662 = vld [vmem:[#allocation11 + $0x24] sm:$0xf]
    %v663 = vld [vmem:[#allocation11 + $0x28] sm:$0xf]
    %v664 = vld [vmem:[#allocation11 + $0x2c] sm:$0xf]
    %v665 = vld [vmem:[#allocation11 + $0x30] sm:$0xf]
    %v666 = vld [vmem:[#allocation11 + $0x34] sm:$0xf]
    %v667 = vld [vmem:[#allocation11 + $0x38] sm:$0xf]
    %v668 = vld [vmem:[#allocation11 + $0x3c] sm:$0xf]
    %v669 = vld [vmem:[%s10] sm:$0x1]
    %v671 = vlaneseq
    %v672 = vshrl.u32 %v671, 7
    %v673 = vsub.s32 0, %v672
    %v674 = vrot.slane %v669, %v673
    %v692 = vunpack.c.l.b16 %v653
    %v693 = vunpack.c.l.b16 %v654
    %v694 = vunpack.c.l.b16 %v655
    %v695 = vunpack.c.l.b16 %v656
    %v696 = vunpack.c.l.b16 %v657
    %v697 = vunpack.c.l.b16 %v658
    %v698 = vunpack.c.l.b16 %v659
    %v699 = vunpack.c.l.b16 %v660
    %v700 = vunpack.c.l.b16 %v661
    %v701 = vunpack.c.l.b16 %v662
    %v702 = vunpack.c.l.b16 %v663
    %v703 = vunpack.c.l.b16 %v664
    %v704 = vunpack.c.l.b16 %v665
    %v705 = vunpack.c.l.b16 %v666
    %v706 = vunpack.c.l.b16 %v667
    %v707 = vunpack.c.l.b16 %v668
    %v708 = vpack.c.b16 %v693, %v692
    %v709 = vpack.c.b16 %v695, %v694
    %v710 = vpack.c.b16 %v697, %v696
    %v711 = vpack.c.b16 %v699, %v698
    %v712 = vpack.c.b16 %v701, %v700
    %v713 = vpack.c.b16 %v703, %v702
    %v714 = vpack.c.b16 %v705, %v704
    %v715 = vpack.c.b16 %v707, %v706
    %724 = vmatprep.subr.bf16.mxu0 0
    %725 = vmatpush1.bf16.msra.mxu0 %v708
    %726 = vmatprep.subr.bf16.mxu0 0
    %727 = vmatpush1.bf16.msra.mxu0 %v709
    %728 = vmatprep.subr.bf16.mxu0 0
    %729 = vmatpush1.bf16.msra.mxu0 %v710
    %730 = vmatprep.subr.bf16.mxu0 0
    %731 = vmatpush1.bf16.msra.mxu0 %v711
    %732 = vmatprep.subr.bf16.mxu0 0
    %733 = vmatpush1.bf16.msra.mxu0 %v712
    %734 = vmatprep.subr.bf16.mxu0 0
    %735 = vmatpush1.bf16.msra.mxu0 %v713
    %736 = vmatprep.subr.bf16.mxu0 0
    %737 = vmatpush1.bf16.msra.mxu0 %v714
    %738 = vmatprep.subr.bf16.mxu0 0
    %739 = vmatpush1.bf16.msra.mxu0 %v715
    %740 = vmatprep.subr.bf16.mxu0 0
    %741 = vmatpush1.bf16.msra.mxu0 0
    %742 = vmatprep.subr.bf16.mxu0 0
    %743 = vmatpush1.bf16.msra.mxu0 0
    %744 = vmatprep.subr.bf16.mxu0 0
    %745 = vmatpush1.bf16.msra.mxu0 0
    %746 = vmatprep.subr.bf16.mxu0 0
    %747 = vmatpush1.bf16.msra.mxu0 0
    %748 = vmatprep.subr.bf16.mxu0 0
    %749 = vmatpush1.bf16.msra.mxu0 0
    %750 = vmatprep.subr.bf16.mxu0 0
    %751 = vmatpush1.bf16.msra.mxu0 0
    %752 = vmatprep.subr.bf16.mxu0 0
    %753 = vmatpush1.bf16.msra.mxu0 0
    %754 = vmatprep.subr.bf16.mxu0 0
    %755 = vmatpush1.bf16.msra.mxu0 0
    %756 = vmatprep.mubr.bf16.mxu0 0
    %757 = vmatmul.mubr.bf16.gmra.mrb[0].mxu0 %v651
    %v758 = vpop.f32.mrb[0].mxu0
    %v759 = vadd.f32 %v674, %v758
    %v760 = vpop.f32.mrb[0].mxu0
    %v761 = vpop.f32.mrb[0].mxu0
    %v762 = vadd.f32 %v674, %v761
    %v763 = vpop.f32.mrb[0].mxu0
    %764 = vmatprep.mubr.bf16.mxu0 0
    %765 = vmatmul.mubr.bf16.gmra.mrb[0].mxu0 %v652
    %v766 = vpop.f32.mrb[0].mxu0
    %v767 = vadd.f32 %v674, %v766
    %v768 = vpop.f32.mrb[0].mxu0
    %v769 = vpop.f32.mrb[0].mxu0
    %v770 = vadd.f32 %v674, %v769
    %v771 = vpop.f32.mrb[0].mxu0
    %772 = vdwg.mxu0
    %v773 = vadd.f32 %v521, %v759
    %v774 = vadd.f32 %v522, %v762
    %v775 = vadd.f32 %v523, %v767
    %v776 = vadd.f32 %v524, %v770
    %v777 = vld [vmem:[%s11] sm:$0x1]
    %v779 = vlaneseq
    %v780 = vshrl.u32 %v779, 7
    %v781 = vsub.s32 0, %v780
    %v782 = vrot.slane %v777, %v781
    %v784 = vmul.f32 %v773, %v782
    %v785 = vmul.f32 %v774, %v782
    %v786 = vmul.f32 %v775, %v782
    %v787 = vmul.f32 %v776, %v782
    %v788 = vld [vmem:[%s12] sm:$0x1]
    %v790 = vlaneseq
    %v791 = vshrl.u32 %v790, 7
    %v792 = vsub.s32 0, %v791
    %v793 = vrot.slane %v788, %v792
    %v795 = vadd.f32 %v784, %v793
    %v796 = vadd.f32 %v785, %v793
    %v797 = vadd.f32 %v786, %v793
    %v798 = vadd.f32 %v787, %v793
    %v799 = vmax.f32 %v795, 0.0
    %v800 = vmax.f32 %v796, 0.0
    %v801 = vmax.f32 %v797, 0.0
    %v802 = vmax.f32 %v798, 0.0
    %v803 = vpack.c.bf16 %v800, %v799
    %v804 = vpack.c.bf16 %v802, %v801
    %v805 = vld [vmem:[#allocation13] sm:$0xf]
    %v806 = vld [vmem:[#allocation13 + $0x4] sm:$0xf]
    %v807 = vld [vmem:[#allocation13 + $0x8] sm:$0xf]
    %v808 = vld [vmem:[#allocation13 + $0xc] sm:$0xf]
    %v809 = vld [vmem:[#allocation13 + $0x10] sm:$0xf]
    %v810 = vld [vmem:[#allocation13 + $0x14] sm:$0xf]
    %v811 = vld [vmem:[#allocation13 + $0x18] sm:$0xf]
    %v812 = vld [vmem:[#allocation13 + $0x1c] sm:$0xf]
    %v813 = vld [vmem:[#allocation13 + $0x20] sm:$0xf]
    %v814 = vld [vmem:[#allocation13 + $0x24] sm:$0xf]
    %v815 = vld [vmem:[#allocation13 + $0x28] sm:$0xf]
    %v816 = vld [vmem:[#allocation13 + $0x2c] sm:$0xf]
    %v817 = vld [vmem:[#allocation13 + $0x30] sm:$0xf]
    %v818 = vld [vmem:[#allocation13 + $0x34] sm:$0xf]
    %v819 = vld [vmem:[#allocation13 + $0x38] sm:$0xf]
    %v820 = vld [vmem:[#allocation13 + $0x3c] sm:$0xf]
    %v821 = vld [vmem:[%s14] sm:$0x1]
    %v823 = vlaneseq
    %v824 = vshrl.u32 %v823, 7
    %v825 = vsub.s32 0, %v824
    %v826 = vrot.slane %v821, %v825
    %v844 = vunpack.c.l.b16 %v805
    %v845 = vunpack.c.l.b16 %v806
    %v846 = vunpack.c.l.b16 %v807
    %v847 = vunpack.c.l.b16 %v808
    %v848 = vunpack.c.l.b16 %v809
    %v849 = vunpack.c.l.b16 %v810
    %v850 = vunpack.c.l.b16 %v811
    %v851 = vunpack.c.l.b16 %v812
    %v852 = vunpack.c.l.b16 %v813
    %v853 = vunpack.c.l.b16 %v814
    %v854 = vunpack.c.l.b16 %v815
    %v855 = vunpack.c.l.b16 %v816
    %v856 = vunpack.c.l.b16 %v817
    %v857 = vunpack.c.l.b16 %v818
    %v858 = vunpack.c.l.b16 %v819
    %v859 = vunpack.c.l.b16 %v820
    %v860 = vpack.c.b16 %v845, %v844
    %v861 = vpack.c.b16 %v847, %v846
    %v862 = vpack.c.b16 %v849, %v848
    %v863 = vpack.c.b16 %v851, %v850
    %v864 = vpack.c.b16 %v853, %v852
    %v865 = vpack.c.b16 %v855, %v854
    %v866 = vpack.c.b16 %v857, %v856
    %v867 = vpack.c.b16 %v859, %v858
    %876 = vmatprep.subr.bf16.mxu0 0
    %877 = vmatpush1.bf16.msra.mxu0 %v860
    %878 = vmatprep.subr.bf16.mxu0 0
    %879 = vmatpush1.bf16.msra.mxu0 %v861
    %880 = vmatprep.subr.bf16.mxu0 0
    %881 = vmatpush1.bf16.msra.mxu0 %v862
    %882 = vmatprep.subr.bf16.mxu0 0
    %883 = vmatpush1.bf16.msra.mxu0 %v863
    %884 = vmatprep.subr.bf16.mxu0 0
    %885 = vmatpush1.bf16.msra.mxu0 %v864
    %886 = vmatprep.subr.bf16.mxu0 0
    %887 = vmatpush1.bf16.msra.mxu0 %v865
    %888 = vmatprep.subr.bf16.mxu0 0
    %889 = vmatpush1.bf16.msra.mxu0 %v866
    %890 = vmatprep.subr.bf16.mxu0 0
    %891 = vmatpush1.bf16.msra.mxu0 %v867
    %892 = vmatprep.subr.bf16.mxu0 0
    %893 = vmatpush1.bf16.msra.mxu0 0
    %894 = vmatprep.subr.bf16.mxu0 0
    %895 = vmatpush1.bf16.msra.mxu0 0
    %896 = vmatprep.subr.bf16.mxu0 0
    %897 = vmatpush1.bf16.msra.mxu0 0
    %898 = vmatprep.subr.bf16.mxu0 0
    %899 = vmatpush1.bf16.msra.mxu0 0
    %900 = vmatprep.subr.bf16.mxu0 0
    %901 = vmatpush1.bf16.msra.mxu0 0
    %902 = vmatprep.subr.bf16.mxu0 0
    %903 = vmatpush1.bf16.msra.mxu0 0
    %904 = vmatprep.subr.bf16.mxu0 0
    %905 = vmatpush1.bf16.msra.mxu0 0
    %906 = vmatprep.subr.bf16.mxu0 0
    %907 = vmatpush1.bf16.msra.mxu0 0
    %908 = vmatprep.mubr.bf16.mxu0 0
    %909 = vmatmul.mubr.bf16.gmra.mrb[0].mxu0 %v803
    %v910 = vpop.f32.mrb[0].mxu0
    %v911 = vadd.f32 %v826, %v910
    %v912 = vpop.f32.mrb[0].mxu0
    %v913 = vpop.f32.mrb[0].mxu0
    %v914 = vadd.f32 %v826, %v913
    %v915 = vpop.f32.mrb[0].mxu0
    %916 = vmatprep.mubr.bf16.mxu0 0
    %917 = vmatmul.mubr.bf16.gmra.mrb[0].mxu0 %v804
    %v918 = vpop.f32.mrb[0].mxu0
    %v919 = vadd.f32 %v826, %v918
    %v920 = vpop.f32.mrb[0].mxu0
    %v921 = vpop.f32.mrb[0].mxu0
    %v922 = vadd.f32 %v826, %v921
    %v923 = vpop.f32.mrb[0].mxu0
    %924 = vdwg.mxu0
    %925 = vst [vmem:[#allocation14] sm:$0xff] %v911
    %926 = vst [vmem:[#allocation14 + $0x8] sm:$0xff] %v914
    %927 = vst [vmem:[#allocation14 + $0x10] sm:$0xff] %v919
    %928 = vst [vmem:[#allocation14 + $0x18] sm:$0xff] %v922
    // Predicated region
    $region90: #{tpu_custom_call.1} parent=1 // pred_check
      _
    $region91: #{tpu_custom_call.1} parent=1 // pred_check_branch
      %930 = sbr.rel (0) target = $region93
    $region92: #{tpu_custom_call.1} parent=1 // pred_region
      %s932 = ssub.s32 512, 512
      %933 = vsyncadd [#allocation4], %s932
      %s934 = sshll.u32 [#allocation14], 4
      %s935 = int_to_ptr.vmem [resolvable:$true] %s934
      %940 = dma.vmem_to_hbm [thread:$0]  %s935, 512, %s15, [#allocation4], 128, 128, 8
    $region93: #{tpu_custom_call.1} parent=1 // pred_fallthru
      _
    // Predicated region
    $region94: #{tpu_custom_call.1} parent=1 // pred_check
      _
    $region95: #{tpu_custom_call.1} parent=1 // pred_check_branch
      %942 = sbr.rel (0) target = $region97
    $region96: #{tpu_custom_call.1} parent=1 // pred_region
      %943 = dma.done [#allocation4], 512
    $region97: #{tpu_custom_call.1} parent=1 // pred_fallthru
      _
    %944 = vsyncpa [#allocation3], 1
    %945 = vsyncpa [#allocation6], 1
    %946 = vsyncpa [#allocation9], 1
    %947 = vsyncpa [#allocation12], 1
    %948 = vsyncpa [#allocation4], 1

</llo_original>
